<compile_context>
chip_gen: v6e
topology: v6e:2x2x1
jax: 0.10.0
libtpu: 0.0.40
codegen_flags: <defaults>
</compile_context>

<pallas_src>
import jax
import jax.numpy as jnp
from jax.experimental import pallas as pl
from jax.experimental.pallas import tpu as pltpu


def _attention_kernel(xf_ref, w_ref, bu_ref, o_ref):
    # xf_ref: (Bb*T, D) flattened batch block; w_ref: (D, K); bu_ref: (2, K) = [b; u^T];
    # o_ref: (Bb, D).
    BT, D = xf_ref.shape
    Bb = o_ref.shape[0]
    T = BT // Bb
    K = w_ref.shape[1]

    xf = xf_ref[...]                                   # (Bb*T, D)
    bu = bu_ref[...]                                   # (2, K)
    b = bu[0:1, :]                                     # (1, K)
    u = bu[1:2, :]                                     # (1, K)

    # MXU pass with the batch folded into M; f32 accumulation.
    h = jnp.tanh(
        jnp.dot(xf, w_ref[...], preferred_element_type=jnp.float32) + b
    )                                                  # (Bb*T, K), K on lanes

    # u-projection: VPU multiply + lane (K) reduce with keepdims -> T stays on sublanes.
    # (T is a multiple of 8 here, so these splits sit on sublane-tile boundaries.)
    logits = jnp.sum(h.reshape(Bb, T, K) * u, axis=-1, keepdims=True)   # (Bb, T, 1)

    # Numerically stable softmax over the sequence axis (sublane reduce).
    m = jnp.max(logits, axis=1, keepdims=True)         # (Bb, 1, 1)
    e = jnp.exp(logits - m)                            # (Bb, T, 1)
    attn = e * pl.reciprocal(jnp.sum(e, axis=1, keepdims=True), approx=False)

    # TODO(synk): optional `mask` argument (a_it * mask) not plumbed in; mask=None only.

    # Weighted sum over T -> single lane-dense (Bb, D) store.
    x3 = xf.reshape(Bb, T, D)
    o_ref[...] = jnp.sum(x3 * attn, axis=1).astype(o_ref.dtype)


def _round_up(x, m):
    return (x + m - 1) // m * m


def _padded_vmem_bytes(rows, cols, itemsize=4):
    # VMEM tiles are (8, 128) x 32-bit; a D=32 last dim still occupies 128 lanes.
    return _round_up(max(rows, 1), 8) * _round_up(max(cols, 1), 128) * itemsize


def _pick_batch_block(B, T, D, max_padded_block_bytes=4 << 20):
    """Largest batch block whose lane-padded (Bb*T, D) tile fits the budget.

    Returns either the whole batch, or a multiple-of-8 divisor of B so the flat
    (Bb*T, D) input block and (Bb, D) output block satisfy the (8, 128) rules.
    """
    if _padded_vmem_bytes(B * T, D) <= max_padded_block_bytes:
        return B
    best = None
    for bb in range(8, B, 8):
        if B % bb == 0 and _padded_vmem_bytes(bb * T, D) <= max_padded_block_bytes:
            best = bb
    return best if best is not None else B


def attention_layer(x, W, b, u):
    """x: (B, T, D); W: (D, K); b: (K,); u: (K, 1) -> (B, D)."""
    B, T, D = x.shape
    K = W.shape[1]

    # Merge the two tiny parameters into one (2, K) array: one DMA instead of two.
    bu = jnp.concatenate([b.reshape(1, K), u.reshape(1, K)], axis=0)

    # Flatten batch*seq in HBM (metadata-only) so the kernel's MXU input needs no
    # cross-tile reshape.
    xf = x.reshape(B * T, D)

    Bb = _pick_batch_block(B, T, D)
    grid = (B // Bb,)

    # Rough double-buffered VMEM footprint; raise the scoped limit only if the
    # conservative per-chip defaults (16 MiB on v5e) would be exceeded.
    est = (2 * _padded_vmem_bytes(Bb * T, D)      # x block, double-buffered
           + 2 * _padded_vmem_bytes(Bb, D)        # out block, double-buffered
           + _padded_vmem_bytes(D, K)             # W (resident)
           + _padded_vmem_bytes(2, K))            # [b; u] (resident)
    compiler_kwargs = {}
    if est > (12 << 20):
        compiler_kwargs["vmem_limit_bytes"] = min(est + (4 << 20), 48 << 20)

    return pl.pallas_call(
        _attention_kernel,
        out_shape=jax.ShapeDtypeStruct((B, D), x.dtype),
        grid_spec=pltpu.PrefetchScalarGridSpec(
            num_scalar_prefetch=0,
            grid=grid,
            in_specs=[
                pl.BlockSpec((Bb * T, D), lambda i: (i, 0)),   # x (flat), batch-tiled
                pl.BlockSpec((D, K), lambda i: (0, 0)),        # W, resident
                pl.BlockSpec((2, K), lambda i: (0, 0)),        # [b; u], resident
            ],
            out_specs=pl.BlockSpec((Bb, D), lambda i: (i, 0)),
        ),
        compiler_params=pltpu.CompilerParams(
            dimension_semantics=("parallel",),   # batch blocks are independent
            **compiler_kwargs,
        ),
    )(xf, W, bu)


def attention_layer_ref(x, W, b, u):
    # Pure-JAX reference mirroring the PyTorch forward (mask=None path).
    u_it = jnp.tanh(jnp.matmul(x, W) + b)                 # (B, T, K)
    a_it = jnp.squeeze(jnp.matmul(u_it, u), -1)           # (B, T)
    a_it = jax.nn.softmax(a_it, axis=-1)
    weighted = x * a_it[..., None]
    return jnp.sum(weighted, axis=1)                      # (B, D)


if __name__ == "__main__":
    # Shapes consistent with the module: opt.d=16, bidirectional=True -> latent_dim D=32,
    # opt.k -> attention_dim K=16; batch B=2, sequence length T=8.
    B, T, D, K = 2, 8, 32, 16

    key = jax.random.PRNGKey(0)
    kx, kw, kb, ku = jax.random.split(key, 4)
    x = jax.random.normal(kx, (B, T, D), dtype=jnp.float32)
    W = jax.random.normal(kw, (D, K), dtype=jnp.float32)
    b = jax.random.normal(kb, (K,), dtype=jnp.float32)
    u = jax.random.normal(ku, (K, 1), dtype=jnp.float32)

    out = attention_layer(x, W, b, u)
    out = jax.block_until_ready(out)

    ref = attention_layer_ref(x, W, b, u)
    assert out.shape == (B, D)
    assert jnp.allclose(out, ref, atol=1e-5, rtol=1e-5), (
        f"max abs diff {jnp.max(jnp.abs(out - ref))}"
    )
    print("KERNEL_OK")
</pallas_src>

<mosaic_0001>
module attributes {stable_mosaic.version = 11 : i64} {
  func.func @_attention_kernel(%arg0: i32, %arg1: memref<16x32xf32, #tpu.memory_space<vmem>>, %arg2: memref<32x16xf32, #tpu.memory_space<vmem>>, %arg3: memref<2x16xf32, #tpu.memory_space<vmem>>, %arg4: memref<2x32xf32, #tpu.memory_space<vmem>>) attributes {dimension_semantics = [#tpu.dimension_semantics<parallel>], iteration_bounds = array<i64: 1>, scalar_prefetch = 0 : i64, scratch_operands = 0 : i64, tpu.core_type = #tpu.core_type<tc>, window_params = [{transform_indices = @transform_0, window_bounds = array<i64: 16, 32>}, {pipeline_mode = #tpu.pipeline_mode<synchronous>, transform_indices = @transform_1, window_bounds = array<i64: 32, 16>}, {pipeline_mode = #tpu.pipeline_mode<synchronous>, transform_indices = @transform_2, window_bounds = array<i64: 2, 16>}, {transform_indices = @transform_3, window_bounds = array<i64: 2, 32>}]} {
    %c0 = arith.constant 0 : index
    %c0_0 = arith.constant 0 : index
    %0 = vector.load %arg1[%c0, %c0_0] : memref<16x32xf32, #tpu.memory_space<vmem>>, vector<16x32xf32>
    %c0_1 = arith.constant 0 : index
    %c0_2 = arith.constant 0 : index
    %1 = vector.load %arg3[%c0_1, %c0_2] : memref<2x16xf32, #tpu.memory_space<vmem>>, vector<2x16xf32>
    %2 = vector.extract_strided_slice %1 {offsets = [0, 0], sizes = [1, 16], strides = [1, 1]} : vector<2x16xf32> to vector<1x16xf32>
    %3 = vector.extract_strided_slice %1 {offsets = [1, 0], sizes = [1, 16], strides = [1, 1]} : vector<2x16xf32> to vector<1x16xf32>
    %c0_3 = arith.constant 0 : index
    %c0_4 = arith.constant 0 : index
    %4 = vector.load %arg2[%c0_3, %c0_4] : memref<32x16xf32, #tpu.memory_space<vmem>>, vector<32x16xf32>
    %cst = arith.constant dense<0.000000e+00> : vector<16x16xf32>
    %5 = tpu.matmul %0, %4, %cst {dimension_numbers = #tpu.dot_dimension_numbers<[1], [0], [0], [1], [0, 0, 1, 1], [], []>} : vector<16x32xf32>, vector<32x16xf32>, vector<16x16xf32> -> vector<16x16xf32>
    %6 = vector.broadcast %2 : vector<1x16xf32> to vector<16x16xf32>
    %7 = arith.addf %5, %6 : vector<16x16xf32>
    %8 = math.tanh %7 : vector<16x16xf32>
    %9 = vector.shape_cast %8 : vector<16x16xf32> to vector<2x8x16xf32>
    %10 = vector.shape_cast %3 : vector<1x16xf32> to vector<1x1x16xf32>
    %11 = vector.broadcast %10 : vector<1x1x16xf32> to vector<2x8x16xf32>
    %12 = arith.mulf %9, %11 : vector<2x8x16xf32>
    %cst_5 = arith.constant dense<0.000000e+00> : vector<2x8xf32>
    %13 = vector.multi_reduction <add>, %12, %cst_5 [2] : vector<2x8x16xf32> to vector<2x8xf32>
    %14 = vector.shape_cast %13 : vector<2x8xf32> to vector<2x8x1xf32>
    %cst_6 = arith.constant dense<0xFF800000> : vector<2x1xf32>
    %15 = vector.multi_reduction <maximumf>, %14, %cst_6 [1] : vector<2x8x1xf32> to vector<2x1xf32>
    %16 = vector.shape_cast %15 : vector<2x1xf32> to vector<2x1x1xf32>
    %17 = vector.broadcast %16 : vector<2x1x1xf32> to vector<2x8x1xf32>
    %18 = arith.subf %14, %17 : vector<2x8x1xf32>
    %19 = math.exp %18 : vector<2x8x1xf32>
    %cst_7 = arith.constant dense<0.000000e+00> : vector<2x1xf32>
    %20 = vector.multi_reduction <add>, %19, %cst_7 [1] : vector<2x8x1xf32> to vector<2x1xf32>
    %21 = vector.shape_cast %20 : vector<2x1xf32> to vector<2x1x1xf32>
    %22 = tpu.reciprocal %21 : vector<2x1x1xf32> -> vector<2x1x1xf32>
    %23 = vector.broadcast %22 : vector<2x1x1xf32> to vector<2x8x1xf32>
    %24 = arith.mulf %19, %23 : vector<2x8x1xf32>
    %25 = vector.shape_cast %0 : vector<16x32xf32> to vector<2x8x32xf32>
    %26 = vector.broadcast %24 : vector<2x8x1xf32> to vector<2x8x32xf32>
    %27 = arith.mulf %25, %26 : vector<2x8x32xf32>
    %cst_8 = arith.constant dense<0.000000e+00> : vector<2x32xf32>
    %28 = vector.multi_reduction <add>, %27, %cst_8 [1] : vector<2x8x32xf32> to vector<2x32xf32>
    %c0_9 = arith.constant 0 : index
    %c0_10 = arith.constant 0 : index
    %29 = vector.load %arg4[%c0_9, %c0_10] : memref<2x32xf32, #tpu.memory_space<vmem>>, vector<2x32xf32>
    tpu.vector_store %arg4[%c0_9, %c0_10], %28 {strides = array<i32>} : memref<2x32xf32, #tpu.memory_space<vmem>>, vector<2x32xf32>,
    return
  }
  func.func @transform_0(%arg0: i32) -> (i32, i32) {
    %c0_i32 = arith.constant 0 : i32
    %c0_i32_0 = arith.constant 0 : i32
    return %arg0, %c0_i32 : i32, i32
  }
  func.func @transform_1(%arg0: i32) -> (i32, i32) {
    %c0_i32 = arith.constant 0 : i32
    %c0_i32_0 = arith.constant 0 : i32
    %c0_i32_1 = arith.constant 0 : i32
    return %c0_i32, %c0_i32_0 : i32, i32
  }
  func.func @transform_2(%arg0: i32) -> (i32, i32) {
    %c0_i32 = arith.constant 0 : i32
    %c0_i32_0 = arith.constant 0 : i32
    %c0_i32_1 = arith.constant 0 : i32
    return %c0_i32, %c0_i32_0 : i32, i32
  }
  func.func @transform_3(%arg0: i32) -> (i32, i32) {
    %c0_i32 = arith.constant 0 : i32
    %c0_i32_0 = arith.constant 0 : i32
    return %arg0, %c0_i32 : i32, i32
  }
}

</mosaic_0001>

<llo_original>
// kernel: tpu_custom_call.1
$region0: #{tpu_custom_call.1}
  #allocation0 [shape = 'u32[]', space=smem, size = 0x4, offset = 0x4, fixed_abs, tag = 'smem constant byte address 0x4 - core index']
  #allocation1 [shape = 'u32[144,128]{1,0:T(1,128)}', space=vmem, size = 0x12000, scoped, tag = 'internal scratch']
  %s0 = inlined_call_operand.vmem [shape: f32[16,32], index: 0, kind: input, shape index: {}]
  %s1 = inlined_call_operand.vmem [shape: f32[32,16], index: 1, kind: input, shape index: {}]
  %s2 = inlined_call_operand.vmem [shape: f32[2,16], index: 2, kind: input, shape index: {}]
  %s3 = inlined_call_operand.hbm [shape: f32[2,32], index: 3, kind: output, shape index: {}]
  %s4 = sld [smem:[#allocation0]]
  $region22: #{tpu_custom_call.1} parent=0
    _
  %s6 = ssub.s32 1, %s4
  %s7 = scalar_select 0, %s6, %s4
  $region1: #{tpu_custom_call.1} parent=0
    #allocation2 [shape = 'u8[1024]{0}', space=vmem, size = 0x400, scoped, tag = 'output window, operand 0, single buffered']
    #allocation3 [shape = 's32[1]{0}', space=sflag, size = 0x4, scoped, tag = 'scoped memory for tpu_custom_call.1']
    %8 = vsyncpa [#allocation3], 0
    // Predicated region
    $region2: #{tpu_custom_call.1} parent=1 // pred_check
      _
    $region3: #{tpu_custom_call.1} parent=1 // pred_check_branch
      %10 = sbr.rel (0) target = $region5
    $region4: #{tpu_custom_call.1} parent=1 // pred_region
      _
    $region5: #{tpu_custom_call.1} parent=1 // pred_fallthru
      _
    // Predicated region
    $region6: #{tpu_custom_call.1} parent=1 // pred_check
      _
    $region7: #{tpu_custom_call.1} parent=1 // pred_check_branch
      %12 = sbr.rel (0) target = $region9
    $region8: #{tpu_custom_call.1} parent=1 // pred_region
      _
    $region9: #{tpu_custom_call.1} parent=1 // pred_fallthru
      _
    // Predicated region
    $region10: #{tpu_custom_call.1} parent=1 // pred_check
      _
    $region11: #{tpu_custom_call.1} parent=1 // pred_check_branch
      %14 = sbr.rel (0) target = $region13
    $region12: #{tpu_custom_call.1} parent=1 // pred_region
      _
    $region13: #{tpu_custom_call.1} parent=1 // pred_fallthru
      _
    %v15 = vld [vmem:[%s0] sm:$0xff]
    %v16 = vld [vmem:[%s0 + $0x8] sm:$0xff]
    %v17 = vld [vmem:[%s2] sm:$0x3]
    %v18 = vld [vmem:[%s1] sm:$0xff]
    %v19 = vld [vmem:[%s1 + $0x8] sm:$0xff]
    %v20 = vld [vmem:[%s1 + $0x10] sm:$0xff]
    %v21 = vld [vmem:[%s1 + $0x18] sm:$0xff]
    %v22 = vlaneseq
    %v23 = vshrl.u32 %v22, 7
    %v24 = vsub.s32 0, %v23
    %v25 = vrot.slane %v17, %v24
    %vm26 = vcmask 261120
    %v28 = vsel %vm26, %v15, 0
    %v31 = vsel %vm26, %v16, 0
    %33 = vmatprep.subr.mxu0 0.0
    %34 = vmatpush1.msra.mxu0 0.0
    %35 = vmatprep.subr.mxu0 0.0
    %36 = vmatpush1.msra.mxu0 0.0
    %37 = vmatprep.subr.mxu0 0.0
    %38 = vmatpush1.msra.mxu0 0.0
    %39 = vmatprep.subr.mxu0 0.0
    %40 = vmatpush1.msra.mxu0 0.0
    %41 = vmatprep.subr.mxu0 0.0
    %42 = vmatpush1.msra.mxu0 0.0
    %43 = vmatprep.subr.mxu0 0.0
    %44 = vmatpush1.msra.mxu0 0.0
    %45 = vmatprep.subr.mxu0 0.0
    %46 = vmatpush1.msra.mxu0 0.0
    %47 = vmatprep.subr.mxu0 0.0
    %48 = vmatpush1.msra.mxu0 0.0
    %49 = vmatprep.subr.mxu0 0.0
    %50 = vmatpush1.msra.mxu0 0.0
    %51 = vmatprep.subr.mxu0 0.0
    %52 = vmatpush1.msra.mxu0 0.0
    %53 = vmatprep.subr.mxu0 0.0
    %54 = vmatpush1.msra.mxu0 0.0
    %55 = vmatprep.subr.mxu0 0.0
    %56 = vmatpush1.msra.mxu0 0.0
    %57 = vmatprep.subr.mxu0 0.0
    %58 = vmatpush1.msra.mxu0 %v21
    %59 = vmatprep.subr.mxu0 0.0
    %60 = vmatpush1.msra.mxu0 %v20
    %61 = vmatprep.subr.mxu0 0.0
    %62 = vmatpush1.msra.mxu0 %v19
    %63 = vmatprep.subr.mxu0 0.0
    %64 = vmatpush1.msra.mxu0 %v18
    %65 = vmatprep.subr.mxu0 0.0
    %66 = vmatpush2.msra.mxu0 0.0
    %67 = vmatprep.subr.mxu0 0.0
    %68 = vmatpush2.msra.mxu0 0.0
    %69 = vmatprep.subr.mxu0 0.0
    %70 = vmatpush2.msra.mxu0 0.0
    %71 = vmatprep.subr.mxu0 0.0
    %72 = vmatpush2.msra.mxu0 0.0
    %73 = vmatprep.subr.mxu0 0.0
    %74 = vmatpush2.msra.mxu0 0.0
    %75 = vmatprep.subr.mxu0 0.0
    %76 = vmatpush2.msra.mxu0 0.0
    %77 = vmatprep.subr.mxu0 0.0
    %78 = vmatpush2.msra.mxu0 0.0
    %79 = vmatprep.subr.mxu0 0.0
    %80 = vmatpush2.msra.mxu0 0.0
    %81 = vmatprep.subr.mxu0 0.0
    %82 = vmatpush2.msra.mxu0 0.0
    %83 = vmatprep.subr.mxu0 0.0
    %84 = vmatpush2.msra.mxu0 0.0
    %85 = vmatprep.subr.mxu0 0.0
    %86 = vmatpush2.msra.mxu0 0.0
    %87 = vmatprep.subr.mxu0 0.0
    %88 = vmatpush2.msra.mxu0 0.0
    %89 = vmatprep.subr.mxu0 0.0
    %90 = vmatpush2.msra.mxu0 0.0
    %91 = vmatprep.subr.mxu0 0.0
    %92 = vmatpush2.msra.mxu0 0.0
    %93 = vmatprep.subr.mxu0 0.0
    %94 = vmatpush2.msra.mxu0 0.0
    %95 = vmatprep.subr.mxu0 0.0
    %96 = vmatpush2.msra.mxu0 0.0
    %97 = vmatprep.mubr.f32.mxu0 0.0
    %98 = vmatmul.mubr.f32.gmra.mxu0 %v28
    %v99 = vpop.f32.mrf.mxu0
    %v100 = vadd.f32 %v25, %v99
    %v101 = vpop.f32.mrf.mxu0
    %102 = vmatprep.mubr.f32.mxu0 0.0
    %103 = vmatmul.mubr.f32.gmra.mxu0 %v31
    %v104 = vpop.f32.mrf.mxu0
    %v105 = vadd.f32 %v25, %v104
    %v106 = vpop.f32.mrf.mxu0
    %107 = vdwg.mxu0
    %v108 = vtanh.pop %v100
    %v109 = vtanh.pop %v105
    %v110 = vlaneseq
    %v111 = vshrl.u32 %v110, 7
    %v112 = vsub.s32 1, %v111
    %v113 = vrot.slane %v17, %v112
    %v114 = vmul.f32 %v108, %v113
    %v115 = vmul.f32 %v109, %v113
    %vm116 = vcmask 130048
    %v117 = vsel %vm116, %v114, 0.0
    %118 = vadd.xlane.f32.xlu0 %v117
    %v119 = vpop.xlane.xlu0 %118
    %v120 = vsel %vm116, %v115, 0.0
    %121 = vadd.xlane.f32.xlu0 %v120
    %v122 = vpop.xlane.xlu0 %121
    %v123 = vrot.slane %v119, 4
    %v124 = vmax.f32 %v119, %v123
    %v125 = vrot.slane %v124, 2
    %v126 = vmax.f32 %v124, %v125
    %v127 = vrot.slane %v126, 1
    %v128 = vmax.f32 %v126, %v127
    %v129 = vrot.slane %v122, 4
    %v130 = vmax.f32 %v122, %v129
    %v131 = vrot.slane %v130, 2
    %v132 = vmax.f32 %v130, %v131
    %v133 = vrot.slane %v132, 1
    %v134 = vmax.f32 %v132, %v133
    %v135 = vsub.f32 %v119, %v128
    %v136 = vsub.f32 %v122, %v134
    %v137 = vmul.f32 %v135, 1.442695
    %v138 = vpow.pop %v137
    %v139 = vmul.f32 %v136, 1.442695
    %v140 = vpow.pop %v139
    %v141 = vrot.slane %v138, 4
    %v142 = vadd.f32 %v138, %v141
    %v143 = vrot.slane %v142, 2
    %v144 = vadd.f32 %v142, %v143
    %v145 = vrot.slane %v144, 1
    %v146 = vadd.f32 %v144, %v145
    %v147 = vrot.slane %v140, 4
    %v148 = vadd.f32 %v140, %v147
    %v149 = vrot.slane %v148, 2
    %v150 = vadd.f32 %v148, %v149
    %v151 = vrot.slane %v150, 1
    %v152 = vadd.f32 %v150, %v151
    %v153 = vrcp.pop %v146
    %v154 = vrcp.pop %v152
    %v155 = vmul.f32 %v138, %v153
    %v156 = vmul.f32 %v140, %v154
    %v157 = vmul.f32 %v15, %v155
    %v158 = vmul.f32 %v16, %v156
    %v159 = vsel %vm26, %v157, 0.0
    %v160 = vrot.slane %v159, 4
    %v161 = vadd.f32 %v159, %v160
    %v162 = vrot.slane %v161, 2
    %v163 = vadd.f32 %v161, %v162
    %v164 = vrot.slane %v163, 1
    %v165 = vadd.f32 %v163, %v164
    %v166 = vsel %vm26, %v158, 0.0
    %v167 = vrot.slane %v166, 4
    %v168 = vadd.f32 %v166, %v167
    %v169 = vrot.slane %v168, 2
    %v170 = vadd.f32 %v168, %v169
    %v171 = vrot.slane %v170, 1
    %v172 = vadd.f32 %v170, %v171
    %vm175 = vcmask 1041409
    %v176 = vsel %vm175, %v172, %v165
    %vm178 = vcmask 254976
    %179 = vst.msk [vmem:[#allocation2] sm:$0x3] %vm178, %v176
    // Predicated region
    $region14: #{tpu_custom_call.1} parent=1 // pred_check
      _
    $region15: #{tpu_custom_call.1} parent=1 // pred_check_branch
      %181 = sbr.rel (0) target = $region17
    $region16: #{tpu_custom_call.1} parent=1 // pred_region
      %s183 = ssub.s32 32, 32
      %184 = vsyncadd [#allocation3], %s183
      %s186 = sshll.u32 [#allocation2], 4
      %s187 = int_to_ptr.vmem [resolvable:$true] %s186
      %189 = dma.vmem_to_hbm [thread:$0]  %s187, 32, %s3, [#allocation3]
    $region17: #{tpu_custom_call.1} parent=1 // pred_fallthru
      _
    // Predicated region
    $region18: #{tpu_custom_call.1} parent=1 // pred_check
      _
    $region19: #{tpu_custom_call.1} parent=1 // pred_check_branch
      %191 = sbr.rel (0) target = $region21
    $region20: #{tpu_custom_call.1} parent=1 // pred_region
      %192 = dma.done [#allocation3], 32
    $region21: #{tpu_custom_call.1} parent=1 // pred_fallthru
      _
    %193 = vsyncpa [#allocation3], 1

</llo_original>
